<compile_context>
chip_gen: v7x
topology: tpu7x:2x2x1
jax: 0.10.0
libtpu: 0.0.40
codegen_flags: <defaults>
</compile_context>

<pallas_src>
import jax
import jax.numpy as jnp
from jax.experimental import pallas as pl
from jax.experimental.pallas import tpu as pltpu

_HIDDEN = 128  # fixed by the module


# ----------------------------------------------------------------------------
# Kernel: one batch tile per grid step. All of layer1 + LeakyReLU + layer2 +
# sigmoid happens in VMEM; only the x tile is re-DMA'd per step.
# ----------------------------------------------------------------------------
def discriminator_kernel(x_ref, w1_ref, b1_ref, w2_ref, b2_ref, o_ref):
    x = x_ref[...]                      # (TB, D)    f32 or bf16
    w1 = w1_ref[...]                    # (D, 128)   same dtype as x

    # Layer 1: Linear(image_len, 128) on the MXU, f32 accumulate.
    h = jnp.dot(x, w1, preferred_element_type=jnp.float32) + b1_ref[...]

    # LeakyReLU(negative_slope=0.01) — VPU select, f32.
    h = jnp.where(h > 0, h, 0.01 * h)

    # Layer 2: Linear(128, 1) as elementwise multiply (VPU) + row-reduce (XLU).
    # w2 is lane-dense (1, 128); b2 is a scalar read from SMEM.
    logits = jnp.sum(h * w2_ref[...], axis=-1, keepdims=True) + b2_ref[0]

    # Numerically stable sigmoid on the (TB, 1) slab: exp goes to the EUP, the
    # exact divide on TB values is negligible next to the x stream.
    z = jnp.exp(-jnp.abs(logits))
    o_ref[...] = jnp.where(logits >= 0.0, 1.0 / (1.0 + z), z / (1.0 + z))


# ----------------------------------------------------------------------------
# Tile sizing helpers
# ----------------------------------------------------------------------------
def _vmem_budget_bytes() -> int:
    """~70% of physical VMEM, capped at 96 MiB (v7x=64MiB, v5e/v6e=128MiB)."""
    phys = 64 * 1024 * 1024  # assume the smallest generation (v7x) if unknown
    try:
        phys = int(getattr(pltpu.get_tpu_info(), "vmem_capacity_bytes", phys))
    except Exception:
        pass
    return min(int(phys * 0.70), 96 * 1024 * 1024)


def _derive_batch_tile(B, D, itemsize, budget, block_batch=None):
    align = 16 if itemsize < 4 else 8   # bf16 packs two rows per sublane
    if B <= align:
        return B
    if block_batch is None:
        # Resident bytes: w1 (worst case double-buffered) + biases + slack.
        resident = 2 * D * _HIDDEN * itemsize + 4 * _HIDDEN * 4 + (64 << 10)
        # Per-batch-row bytes: double-buffered x tile + double-buffered output.
        per_row = 2 * D * itemsize + 2 * 4
        tb = (budget - resident) // per_row
        tb = min(max(tb, align), 8192)  # diminishing returns past ~8k rows
    else:
        tb = block_batch
    tb = min(tb, B)
    # Ensure >= 2 balanced grid steps so v7x's two TensorCores both get work.
    if tb >= B:
        tb = ((B + 1) // 2 + align - 1) // align * align
    tb = max(align, (tb // align) * align)
    return min(tb, B)


# ----------------------------------------------------------------------------
# pallas_call builder + public wrapper
# ----------------------------------------------------------------------------
def _build_call(B, D, tb, x_dtype, vmem_limit, single_buffer_weights):
    nb = pl.cdiv(B, tb)
    resident_kw = {"pipeline_mode": pl.Buffered(1)} if single_buffer_weights else {}

    grid_spec = pltpu.PrefetchScalarGridSpec(
        num_scalar_prefetch=0,
        grid=(nb,),
        in_specs=[
            pl.BlockSpec((tb, D), lambda i: (i, 0)),                          # x (streamed)
            pl.BlockSpec((D, _HIDDEN), lambda i: (0, 0), **resident_kw),      # w1 (resident)
            pl.BlockSpec((1, _HIDDEN), lambda i: (0, 0), **resident_kw),      # b1 (resident)
            pl.BlockSpec((1, _HIDDEN), lambda i: (0, 0), **resident_kw),      # w2 (resident)
            pl.BlockSpec(memory_space=pltpu.MemorySpace.SMEM),                # b2 scalar
        ],
        out_specs=pl.BlockSpec((tb, 1), lambda i: (i, 0)),
    )

    itemsize = jnp.dtype(x_dtype).itemsize
    cost = pl.CostEstimate(
        flops=2 * B * D * _HIDDEN + 4 * B * _HIDDEN,
        transcendentals=B,
        bytes_accessed=B * D * itemsize + D * _HIDDEN * itemsize
        + (2 * _HIDDEN + 1) * 4 + B * 4,
    )

    return pl.pallas_call(
        discriminator_kernel,
        out_shape=jax.ShapeDtypeStruct((B, 1), jnp.float32),
        grid_spec=grid_spec,
        compiler_params=pltpu.CompilerParams(
            dimension_semantics=("parallel",),   # megacore-shardable on v7x
            vmem_limit_bytes=vmem_limit,
        ),
        cost_estimate=cost,
    )


def discriminator_forward(x, w1, b1, w2, b2, *, block_batch=None):
    """x: (B, D) f32 or bf16 (pass bf16-at-rest to halve the HBM x stream).

    w1: (D, 128), b1: (1, 128), w2: (1, 128), b2: (1,).
    Returns (B, 1) f32 with the same semantics as the torch module.
    """
    B, D = x.shape
    assert w1.shape == (D, _HIDDEN), "w1 must be (image_len, 128) — torch W1^T"

    # Match w1 to x's dtype (tiny D*H cast); bias / elementwise math stays f32.
    if w1.dtype != x.dtype:
        w1 = w1.astype(x.dtype)
    b1 = b1.astype(jnp.float32).reshape(1, _HIDDEN)
    w2 = w2.astype(jnp.float32).reshape(1, _HIDDEN)
    b2 = b2.astype(jnp.float32).reshape(1)

    budget = _vmem_budget_bytes()
    tb = _derive_batch_tile(B, D, jnp.dtype(x.dtype).itemsize, budget, block_batch)

    try:
        call = _build_call(B, D, tb, x.dtype, budget, single_buffer_weights=True)
        return call(x, w1, b1, w2, b2)
    except Exception:
        # Fallback for JAX versions where pipeline_mode=pl.Buffered(1) is not
        # accepted on top-level pallas_call BlockSpecs: use the default double
        # buffering of the (small) resident weights instead.
        call = _build_call(B, D, tb, x.dtype, budget, single_buffer_weights=False)
        return call(x, w1, b1, w2, b2)


# ----------------------------------------------------------------------------
# Deterministic parameter init, mirroring torch.nn.Linear's default
# U(-1/sqrt(fan_in), 1/sqrt(fan_in)), and a pure-JAX reference.
# ----------------------------------------------------------------------------
def init_params(key, image_len, hidden=_HIDDEN):
    k1, k2, k3, k4 = jax.random.split(key, 4)
    bound1 = 1.0 / (image_len ** 0.5)
    bound2 = 1.0 / (hidden ** 0.5)
    w1 = jax.random.uniform(k1, (image_len, hidden), jnp.float32, -bound1, bound1)
    b1 = jax.random.uniform(k2, (1, hidden), jnp.float32, -bound1, bound1)
    w2 = jax.random.uniform(k3, (1, hidden), jnp.float32, -bound2, bound2)
    b2 = jax.random.uniform(k4, (1,), jnp.float32, -bound2, bound2)
    return w1, b1, w2, b2


def reference_forward(x, w1, b1, w2, b2):
    h = x @ w1 + b1
    h = jnp.where(h > 0, h, 0.01 * h)
    logits = jnp.sum(h * w2, axis=-1, keepdims=True) + b2
    return jax.nn.sigmoid(logits)


if __name__ == "__main__":
    B = 64           # batch — auto-tiling yields 2 balanced grid steps of 32
    IMAGE_LEN = 256  # flattened image length (e.g. 16x16 grayscale)

    key = jax.random.PRNGKey(0)
    kx, kp = jax.random.split(key)
    x = jax.random.normal(kx, (B, IMAGE_LEN), jnp.float32)
    w1, b1, w2, b2 = init_params(kp, IMAGE_LEN)

    ref = reference_forward(x, w1, b1, w2, b2)

    # f32 path (exact, numerically stable sigmoid).
    out = jax.block_until_ready(discriminator_forward(x, w1, b1, w2, b2))
    assert out.shape == (B, 1)
    assert jnp.allclose(out, ref, atol=1e-4), "f32 path mismatch vs. JAX reference"

    # bf16-at-rest path: x is already bf16 from the producer; the wrapper never
    # casts x, so this genuinely halves the HBM x-stream bytes.
    x_bf16 = x.astype(jnp.bfloat16)
    out_bf16 = jax.block_until_ready(discriminator_forward(x_bf16, w1, b1, w2, b2))
    assert jnp.allclose(out_bf16, ref, atol=2e-2), "bf16 path mismatch vs. JAX reference"

    print("KERNEL_OK")
</pallas_src>

<mosaic_0001>
module attributes {stable_mosaic.version = 11 : i64} {
  func.func @discriminator_kernel(%arg0: i32, %arg1: memref<32x256xf32, #tpu.memory_space<vmem>>, %arg2: memref<256x128xf32, #tpu.memory_space<vmem>>, %arg3: memref<1x128xf32, #tpu.memory_space<vmem>>, %arg4: memref<1x128xf32, #tpu.memory_space<vmem>>, %arg5: memref<1xf32, #tpu.memory_space<smem>>, %arg6: memref<32x1xf32, #tpu.memory_space<vmem>>) attributes {dimension_semantics = [#tpu.dimension_semantics<parallel>], iteration_bounds = array<i64: 2>, scalar_prefetch = 0 : i64, scratch_operands = 0 : i64, tpu.core_type = #tpu.core_type<tc>, window_params = [{transform_indices = @transform_0, window_bounds = array<i64: 32, 256>}, {pipeline_mode = #tpu.pipeline_mode<synchronous>, transform_indices = @transform_1, window_bounds = array<i64: 256, 128>}, {pipeline_mode = #tpu.pipeline_mode<synchronous>, transform_indices = @transform_2, window_bounds = array<i64: 1, 128>}, {pipeline_mode = #tpu.pipeline_mode<synchronous>, transform_indices = @transform_3, window_bounds = array<i64: 1, 128>}, {transform_indices = @transform_4, window_bounds = array<i64: 1>}, {transform_indices = @transform_5, window_bounds = array<i64: 32, 1>}]} {
    %c0 = arith.constant 0 : index
    %c0_0 = arith.constant 0 : index
    %0 = vector.load %arg1[%c0, %c0_0] : memref<32x256xf32, #tpu.memory_space<vmem>>, vector<32x256xf32>
    %c0_1 = arith.constant 0 : index
    %c0_2 = arith.constant 0 : index
    %1 = vector.load %arg2[%c0_1, %c0_2] : memref<256x128xf32, #tpu.memory_space<vmem>>, vector<256x128xf32>
    %cst = arith.constant dense<0.000000e+00> : vector<32x128xf32>
    %2 = tpu.matmul %0, %1, %cst {dimension_numbers = #tpu.dot_dimension_numbers<[1], [0], [0], [1], [0, 0, 1, 1], [], []>} : vector<32x256xf32>, vector<256x128xf32>, vector<32x128xf32> -> vector<32x128xf32>
    %c0_3 = arith.constant 0 : index
    %c0_4 = arith.constant 0 : index
    %3 = vector.load %arg3[%c0_3, %c0_4] : memref<1x128xf32, #tpu.memory_space<vmem>>, vector<1x128xf32>
    %4 = vector.broadcast %3 : vector<1x128xf32> to vector<32x128xf32>
    %5 = arith.addf %2, %4 : vector<32x128xf32>
    %cst_5 = arith.constant 0.000000e+00 : f32
    %6 = vector.broadcast %cst_5 : f32 to vector<32x128xf32>
    %7 = arith.cmpf ogt, %5, %6 : vector<32x128xf32>
    %cst_6 = arith.constant 0.00999999977 : f32
    %8 = vector.broadcast %cst_6 : f32 to vector<32x128xf32>
    %9 = arith.mulf %8, %5 : vector<32x128xf32>
    %10 = arith.select %7, %5, %9 : vector<32x128xi1>, vector<32x128xf32>
    %c0_7 = arith.constant 0 : index
    %c0_8 = arith.constant 0 : index
    %11 = vector.load %arg4[%c0_7, %c0_8] : memref<1x128xf32, #tpu.memory_space<vmem>>, vector<1x128xf32>
    %12 = vector.broadcast %11 : vector<1x128xf32> to vector<32x128xf32>
    %13 = arith.mulf %10, %12 : vector<32x128xf32>
    %cst_9 = arith.constant dense<0.000000e+00> : vector<32xf32>
    %14 = vector.multi_reduction <add>, %13, %cst_9 [1] : vector<32x128xf32> to vector<32xf32>
    %15 = vector.shape_cast %14 : vector<32xf32> to vector<32x1xf32>
    %c0_10 = arith.constant 0 : index
    %16 = memref.load %arg5[%c0_10] : memref<1xf32, #tpu.memory_space<smem>>
    %17 = vector.broadcast %16 : f32 to vector<32x1xf32>
    %18 = arith.addf %15, %17 : vector<32x1xf32>
    %19 = math.absf %18 : vector<32x1xf32>
    %cst_11 = arith.constant 0.000000e+00 : f32
    %20 = vector.broadcast %cst_11 : f32 to vector<32x1xf32>
    %21 = arith.subf %20, %19 : vector<32x1xf32>
    %22 = math.exp %21 : vector<32x1xf32>
    %cst_12 = arith.constant 0.000000e+00 : f32
    %23 = vector.broadcast %cst_12 : f32 to vector<32x1xf32>
    %24 = arith.cmpf oge, %18, %23 : vector<32x1xf32>
    %cst_13 = arith.constant 1.000000e+00 : f32
    %25 = vector.broadcast %cst_13 : f32 to vector<32x1xf32>
    %26 = arith.addf %25, %22 : vector<32x1xf32>
    %cst_14 = arith.constant 1.000000e+00 : f32
    %27 = vector.broadcast %cst_14 : f32 to vector<32x1xf32>
    %28 = arith.divf %27, %26 : vector<32x1xf32>
    %cst_15 = arith.constant 1.000000e+00 : f32
    %29 = vector.broadcast %cst_15 : f32 to vector<32x1xf32>
    %30 = arith.addf %29, %22 : vector<32x1xf32>
    %31 = arith.divf %22, %30 : vector<32x1xf32>
    %32 = arith.select %24, %28, %31 : vector<32x1xi1>, vector<32x1xf32>
    %c0_16 = arith.constant 0 : index
    %c0_17 = arith.constant 0 : index
    %33 = vector.load %arg6[%c0_16, %c0_17] : memref<32x1xf32, #tpu.memory_space<vmem>>, vector<32x1xf32>
    tpu.vector_store %arg6[%c0_16, %c0_17], %32 {strides = array<i32>} : memref<32x1xf32, #tpu.memory_space<vmem>>, vector<32x1xf32>,
    return
  }
  func.func @transform_0(%arg0: i32) -> (i32, i32) {
    %c0_i32 = arith.constant 0 : i32
    %c0_i32_0 = arith.constant 0 : i32
    return %arg0, %c0_i32 : i32, i32
  }
  func.func @transform_1(%arg0: i32) -> (i32, i32) {
    %c0_i32 = arith.constant 0 : i32
    %c0_i32_0 = arith.constant 0 : i32
    %c0_i32_1 = arith.constant 0 : i32
    return %c0_i32, %c0_i32_0 : i32, i32
  }
  func.func @transform_2(%arg0: i32) -> (i32, i32) {
    %c0_i32 = arith.constant 0 : i32
    %c0_i32_0 = arith.constant 0 : i32
    %c0_i32_1 = arith.constant 0 : i32
    return %c0_i32, %c0_i32_0 : i32, i32
  }
  func.func @transform_3(%arg0: i32) -> (i32, i32) {
    %c0_i32 = arith.constant 0 : i32
    %c0_i32_0 = arith.constant 0 : i32
    %c0_i32_1 = arith.constant 0 : i32
    return %c0_i32, %c0_i32_0 : i32, i32
  }
  func.func @transform_4(%arg0: i32) -> i32 {
    %c0_i32 = arith.constant 0 : i32
    %c0_i32_0 = arith.constant 0 : i32
    return %c0_i32 : i32
  }
  func.func @transform_5(%arg0: i32) -> (i32, i32) {
    %c0_i32 = arith.constant 0 : i32
    %c0_i32_0 = arith.constant 0 : i32
    return %arg0, %c0_i32 : i32, i32
  }
}

module attributes {stable_mosaic.version = 11 : i64} {
  func.func @discriminator_kernel(%arg0: i32, %arg1: memref<32x256xf32, #tpu.memory_space<vmem>>, %arg2: memref<256x128xf32, #tpu.memory_space<vmem>>, %arg3: memref<1x128xf32, #tpu.memory_space<vmem>>, %arg4: memref<1x128xf32, #tpu.memory_space<vmem>>, %arg5: memref<1xf32, #tpu.memory_space<smem>>, %arg6: memref<32x1xf32, #tpu.memory_space<vmem>>) attributes {dimension_semantics = [#tpu.dimension_semantics<parallel>], iteration_bounds = array<i64: 2>, scalar_prefetch = 0 : i64, scratch_operands = 0 : i64, tpu.core_type = #tpu.core_type<tc>, window_params = [{transform_indices = @transform_0, window_bounds = array<i64: 32, 256>}, {pipeline_mode = #tpu.pipeline_mode<synchronous>, transform_indices = @transform_1, window_bounds = array<i64: 256, 128>}, {pipeline_mode = #tpu.pipeline_mode<synchronous>, transform_indices = @transform_2, window_bounds = array<i64: 1, 128>}, {pipeline_mode = #tpu.pipeline_mode<synchronous>, transform_indices = @transform_3, window_bounds = array<i64: 1, 128>}, {transform_indices = @transform_4, window_bounds = array<i64: 1>}, {transform_indices = @transform_5, window_bounds = array<i64: 32, 1>}]} {
    %c0 = arith.constant 0 : index
    %c0_0 = arith.constant 0 : index
    %0 = vector.load %arg1[%c0, %c0_0] : memref<32x256xf32, #tpu.memory_space<vmem>>, vector<32x256xf32>
    %c0_1 = arith.constant 0 : index
    %c0_2 = arith.constant 0 : index
    %1 = vector.load %arg2[%c0_1, %c0_2] : memref<256x128xf32, #tpu.memory_space<vmem>>, vector<256x128xf32>
    %cst = arith.constant dense<0.000000e+00> : vector<32x128xf32>
    %2 = tpu.matmul %0, %1, %cst {dimension_numbers = #tpu.dot_dimension_numbers<[1], [0], [0], [1], [0, 0, 1, 1], [], []>} : vector<32x256xf32>, vector<256x128xf32>, vector<32x128xf32> -> vector<32x128xf32>
    %c0_3 = arith.constant 0 : index
    %c0_4 = arith.constant 0 : index
    %3 = vector.load %arg3[%c0_3, %c0_4] : memref<1x128xf32, #tpu.memory_space<vmem>>, vector<1x128xf32>
    %4 = vector.broadcast %3 : vector<1x128xf32> to vector<32x128xf32>
    %5 = arith.addf %2, %4 : vector<32x128xf32>
    %cst_5 = arith.constant 0.000000e+00 : f32
    %6 = vector.broadcast %cst_5 : f32 to vector<32x128xf32>
    %7 = arith.cmpf ogt, %5, %6 : vector<32x128xf32>
    %cst_6 = arith.constant 0.00999999977 : f32
    %8 = vector.broadcast %cst_6 : f32 to vector<32x128xf32>
    %9 = arith.mulf %8, %5 : vector<32x128xf32>
    %10 = arith.select %7, %5, %9 : vector<32x128xi1>, vector<32x128xf32>
    %c0_7 = arith.constant 0 : index
    %c0_8 = arith.constant 0 : index
    %11 = vector.load %arg4[%c0_7, %c0_8] : memref<1x128xf32, #tpu.memory_space<vmem>>, vector<1x128xf32>
    %12 = vector.broadcast %11 : vector<1x128xf32> to vector<32x128xf32>
    %13 = arith.mulf %10, %12 : vector<32x128xf32>
    %cst_9 = arith.constant dense<0.000000e+00> : vector<32xf32>
    %14 = vector.multi_reduction <add>, %13, %cst_9 [1] : vector<32x128xf32> to vector<32xf32>
    %15 = vector.shape_cast %14 : vector<32xf32> to vector<32x1xf32>
    %c0_10 = arith.constant 0 : index
    %16 = memref.load %arg5[%c0_10] : memref<1xf32, #tpu.memory_space<smem>>
    %17 = vector.broadcast %16 : f32 to vector<32x1xf32>
    %18 = arith.addf %15, %17 : vector<32x1xf32>
    %19 = math.absf %18 : vector<32x1xf32>
    %cst_11 = arith.constant 0.000000e+00 : f32
    %20 = vector.broadcast %cst_11 : f32 to vector<32x1xf32>
    %21 = arith.subf %20, %19 : vector<32x1xf32>
    %22 = math.exp %21 : vector<32x1xf32>
    %cst_12 = arith.constant 0.000000e+00 : f32
    %23 = vector.broadcast %cst_12 : f32 to vector<32x1xf32>
    %24 = arith.cmpf oge, %18, %23 : vector<32x1xf32>
    %cst_13 = arith.constant 1.000000e+00 : f32
    %25 = vector.broadcast %cst_13 : f32 to vector<32x1xf32>
    %26 = arith.addf %25, %22 : vector<32x1xf32>
    %cst_14 = arith.constant 1.000000e+00 : f32
    %27 = vector.broadcast %cst_14 : f32 to vector<32x1xf32>
    %28 = arith.divf %27, %26 : vector<32x1xf32>
    %cst_15 = arith.constant 1.000000e+00 : f32
    %29 = vector.broadcast %cst_15 : f32 to vector<32x1xf32>
    %30 = arith.addf %29, %22 : vector<32x1xf32>
    %31 = arith.divf %22, %30 : vector<32x1xf32>
    %32 = arith.select %24, %28, %31 : vector<32x1xi1>, vector<32x1xf32>
    %c0_16 = arith.constant 0 : index
    %c0_17 = arith.constant 0 : index
    %33 = vector.load %arg6[%c0_16, %c0_17] : memref<32x1xf32, #tpu.memory_space<vmem>>, vector<32x1xf32>
    tpu.vector_store %arg6[%c0_16, %c0_17], %32 {strides = array<i32>} : memref<32x1xf32, #tpu.memory_space<vmem>>, vector<32x1xf32>,
    return
  }
  func.func @transform_0(%arg0: i32) -> (i32, i32) {
    %c0_i32 = arith.constant 0 : i32
    %c0_i32_0 = arith.constant 0 : i32
    return %arg0, %c0_i32 : i32, i32
  }
  func.func @transform_1(%arg0: i32) -> (i32, i32) {
    %c0_i32 = arith.constant 0 : i32
    %c0_i32_0 = arith.constant 0 : i32
    %c0_i32_1 = arith.constant 0 : i32
    return %c0_i32, %c0_i32_0 : i32, i32
  }
  func.func @transform_2(%arg0: i32) -> (i32, i32) {
    %c0_i32 = arith.constant 0 : i32
    %c0_i32_0 = arith.constant 0 : i32
    %c0_i32_1 = arith.constant 0 : i32
    return %c0_i32, %c0_i32_0 : i32, i32
  }
  func.func @transform_3(%arg0: i32) -> (i32, i32) {
    %c0_i32 = arith.constant 0 : i32
    %c0_i32_0 = arith.constant 0 : i32
    %c0_i32_1 = arith.constant 0 : i32
    return %c0_i32, %c0_i32_0 : i32, i32
  }
  func.func @transform_4(%arg0: i32) -> i32 {
    %c0_i32 = arith.constant 0 : i32
    %c0_i32_0 = arith.constant 0 : i32
    return %c0_i32 : i32
  }
  func.func @transform_5(%arg0: i32) -> (i32, i32) {
    %c0_i32 = arith.constant 0 : i32
    %c0_i32_0 = arith.constant 0 : i32
    return %arg0, %c0_i32 : i32, i32
  }
}

</mosaic_0001>

<llo_original>
// kernel: tpu_custom_call.1
$region0: #{tpu_custom_call.1}
  #allocation0 [shape = 'u32[]', space=smem, size = 0x4, offset = 0x4, fixed_abs, tag = 'smem constant byte address 0x4 - core index']
  #allocation1 [shape = 'u32[144,128]{1,0:T(1,128)}', space=vmem, size = 0x12000, scoped, tag = 'internal scratch']
  #allocation2 [shape = 'f32[1]{0:T(128)S(6)}', space=smem, size = 0x200, scoped, tag = 'scoped memory for tpu_custom_call.1']
  %s0 = inlined_call_operand.hbm [shape: f32[64,256], index: 0, kind: input, shape index: {}]
  %s1 = inlined_call_operand.hbm [shape: f32[256,128], index: 1, kind: input, shape index: {}]
  %s2 = inlined_call_operand.vmem [shape: f32[1,128], index: 2, kind: input, shape index: {}]
  %s3 = inlined_call_operand.vmem [shape: f32[1,128], index: 3, kind: input, shape index: {}]
  %s4 = inlined_call_operand.<no memory space> [shape: f32[1], index: 4, kind: input, shape index: {}]
  %s5 = inlined_call_operand.vmem [shape: f32[64,1], index: 5, kind: output, shape index: {}]
  %s6 = sld [smem:[#allocation0]]
  $region61: #{tpu_custom_call.1} parent=0
    _
  %s8 = ssub.s32 1, %s6
  %s9 = scalar_select 0, %s8, %s6
  %10 = sst [smem:[#allocation2]] %s4
  $region1: #{tpu_custom_call.1} parent=0
    #allocation3 [shape = 'u8[65536]{0}', space=vmem, size = 0x10000, scoped, tag = 'input window, operand 0']
    #allocation4 [shape = 's32[2]{0}', space=sflag, size = 0x8, scoped, tag = 'scoped memory for tpu_custom_call.1']
    #allocation5 [shape = 'u8[131072]{0}', space=vmem, size = 0x20000, scoped, tag = 'input window, operand 1, single buffered']
    #allocation6 [shape = 's32[1]{0}', space=sflag, size = 0x4, scoped, tag = 'scoped memory for tpu_custom_call.1']
    %11 = vsyncpa [#allocation4], 0
    %s12 = scalar_lea.sflag [#allocation4], 1
    %13 = vsyncpa %s12, 0
    %14 = vsyncpa [#allocation6], 0
    loop: start=0, step=1, limit=4
    $region2: #{tpu_custom_call.1} parent=1 // loop_pre_header
      _
    $region3: #{tpu_custom_call.1} parent=1 // loop_header
      %s16 = sphi 0, %s20
      %p17 = scmp.ge.s32.totalorder %s16, 4
      %s26 = sphi 0, %s28
      %s29 = sphi 0, %s26
      %s30 = sphi 0, %s29
      %s46 = sphi 0, %s30
      %s50 = sphi 0, %s50
      %s52 = sphi 0, %s50
      %s53 = sphi 0, %s52
      %s67 = sphi 0, %s53
      %s71 = sphi 0, %s71
      %s73 = sphi 0, %s71
      %s74 = sphi 0, %s73
      %s88 = sphi 0, %s74
      %s92 = sphi 0, %s92
      %s94 = sphi 0, %s92
      %s95 = sphi 0, %s94
      %s109 = sphi 0, %s95
      %s113 = sphi 0, %s113
      %s115 = sphi 0, %s113
      %s116 = sphi 0, %s115
      %s130 = sphi 0, %s116
      %s136 = sphi 0, %s138
      %s139 = sphi 0, %s136
      %s140 = sphi 0, %s139
      %s156 = sphi 0, %s140
    $region4: #{tpu_custom_call.1} parent=1 // loop_header_branch
      %19 = sbr.rel (%p17) target = $region8
    $region5: #{tpu_custom_call.1} parent=1 // loop_body
      %s21 = ssub.s32 %s16, 1
      %s22 = ssub.s32 %s16, 2
      %s23 = sadd.s32 %s16, 1
      %s24 = ssub.s32 %s16, %s23
      %p25 = scmp.eq.s32.totalorder %s24, 0
      %s27 = sadd.s32 %s26, 1
      %s28 = scalar_select %p25, %s26, %s27
      %p31 = pneg %p25
      %p32 = scmp.eq.s32.totalorder %s16, 1
      %p33 = por %p31, %p32
      %p34 = scmp.ne.s32.totalorder %s26, %s29
      %p35 = scmp.eq.s32.totalorder %s16, 0
      %p36 = por %p34, %p35
      %p37 = scmp.ne.s32.totalorder %s26, %s29
      %p38 = scmp.eq.s32.totalorder %s21, 1
      %p39 = por %p37, %p38
      %p40 = scmp.ne.s32.totalorder %s29, %s30
      %p41 = scmp.eq.s32.totalorder %s21, 0
      %p42 = por %p40, %p41
      %p43 = scmp.ne.s32.totalorder %s29, %s30
      %p44 = scmp.eq.s32.totalorder %s22, 1
      %p45 = por %p43, %p44
      %p47 = scmp.ne.s32.totalorder %s30, %s46
      %p48 = scmp.eq.s32.totalorder %s22, 0
      %p49 = por %p47, %p48
      %s51 = sadd.s32 %s50, 1
      %p54 = scmp.eq.s32.totalorder %s16, 1
      %p55 = scmp.ne.s32.totalorder %s50, %s52
      %p56 = scmp.eq.s32.totalorder %s16, 0
      %p57 = por %p55, %p56
      %p58 = scmp.ne.s32.totalorder %s50, %s52
      %p59 = scmp.eq.s32.totalorder %s21, 1
      %p60 = por %p58, %p59
      %p61 = scmp.ne.s32.totalorder %s52, %s53
      %p62 = scmp.eq.s32.totalorder %s21, 0
      %p63 = por %p61, %p62
      %p64 = scmp.ne.s32.totalorder %s52, %s53
      %p65 = scmp.eq.s32.totalorder %s22, 1
      %p66 = por %p64, %p65
      %p68 = scmp.ne.s32.totalorder %s53, %s67
      %p69 = scmp.eq.s32.totalorder %s22, 0
      %p70 = por %p68, %p69
      %s72 = sadd.s32 %s71, 1
      %p75 = scmp.eq.s32.totalorder %s16, 1
      %p76 = scmp.ne.s32.totalorder %s71, %s73
      %p77 = scmp.eq.s32.totalorder %s16, 0
      %p78 = por %p76, %p77
      %p79 = scmp.ne.s32.totalorder %s71, %s73
      %p80 = scmp.eq.s32.totalorder %s21, 1
      %p81 = por %p79, %p80
      %p82 = scmp.ne.s32.totalorder %s73, %s74
      %p83 = scmp.eq.s32.totalorder %s21, 0
      %p84 = por %p82, %p83
      %p85 = scmp.ne.s32.totalorder %s73, %s74
      %p86 = scmp.eq.s32.totalorder %s22, 1
      %p87 = por %p85, %p86
      %p89 = scmp.ne.s32.totalorder %s74, %s88
      %p90 = scmp.eq.s32.totalorder %s22, 0
      %p91 = por %p89, %p90
      %s93 = sadd.s32 %s92, 1
      %p96 = scmp.eq.s32.totalorder %s16, 1
      %p97 = scmp.ne.s32.totalorder %s92, %s94
      %p98 = scmp.eq.s32.totalorder %s16, 0
      %p99 = por %p97, %p98
      %p100 = scmp.ne.s32.totalorder %s92, %s94
      %p101 = scmp.eq.s32.totalorder %s21, 1
      %p102 = por %p100, %p101
      %p103 = scmp.ne.s32.totalorder %s94, %s95
      %p104 = scmp.eq.s32.totalorder %s21, 0
      %p105 = por %p103, %p104
      %p106 = scmp.ne.s32.totalorder %s94, %s95
      %p107 = scmp.eq.s32.totalorder %s22, 1
      %p108 = por %p106, %p107
      %p110 = scmp.ne.s32.totalorder %s95, %s109
      %p111 = scmp.eq.s32.totalorder %s22, 0
      %p112 = por %p110, %p111
      %s114 = sadd.s32 %s113, 1
      %p117 = scmp.eq.s32.totalorder %s16, 1
      %p118 = scmp.ne.s32.totalorder %s113, %s115
      %p119 = scmp.eq.s32.totalorder %s16, 0
      %p120 = por %p118, %p119
      %p121 = scmp.ne.s32.totalorder %s113, %s115
      %p122 = scmp.eq.s32.totalorder %s21, 1
      %p123 = por %p121, %p122
      %p124 = scmp.ne.s32.totalorder %s115, %s116
      %p125 = scmp.eq.s32.totalorder %s21, 0
      %p126 = por %p124, %p125
      %p127 = scmp.ne.s32.totalorder %s115, %s116
      %p128 = scmp.eq.s32.totalorder %s22, 1
      %p129 = por %p127, %p128
      %p131 = scmp.ne.s32.totalorder %s116, %s130
      %p132 = scmp.eq.s32.totalorder %s22, 0
      %p133 = por %p131, %p132
      %s134 = ssub.s32 %s16, %s23
      %p135 = scmp.eq.s32.totalorder %s134, 0
      %s137 = sadd.s32 %s136, 1
      %s138 = scalar_select %p135, %s136, %s137
      %p141 = pneg %p135
      %p142 = scmp.eq.s32.totalorder %s16, 1
      %p143 = por %p141, %p142
      %p144 = scmp.ne.s32.totalorder %s136, %s139
      %p145 = scmp.eq.s32.totalorder %s16, 0
      %p146 = por %p144, %p145
      %p147 = scmp.ne.s32.totalorder %s136, %s139
      %p148 = scmp.eq.s32.totalorder %s21, 1
      %p149 = por %p147, %p148
      %p150 = scmp.ne.s32.totalorder %s139, %s140
      %p151 = scmp.eq.s32.totalorder %s21, 0
      %p152 = por %p150, %p151
      %p153 = scmp.ne.s32.totalorder %s139, %s140
      %p154 = scmp.eq.s32.totalorder %s22, 1
      %p155 = por %p153, %p154
      %p157 = scmp.ne.s32.totalorder %s140, %s156
      %p158 = scmp.eq.s32.totalorder %s22, 0
      %p159 = por %p157, %p158
      %p160 = scmp.le.s32.totalorder 1, %s16
      %p161 = scmp.lt.s32.totalorder %s16, 3
      %p162 = pnand %p160, %p161
      %p163 = pneg %p162
      // Predicated region
      $region9: #{tpu_custom_call.1} parent=5 // pred_check
        _
      $region10: #{tpu_custom_call.1} parent=5 // pred_check_branch
        %165 = sbr.rel (%p162) target = $region12
      $region11: #{tpu_custom_call.1} parent=5 // pred_region
        %s166 = ssub.s32 %s16, 1
        // Predicated region
        $region13: #{tpu_custom_call.1} parent=11 // pred_check
          %p167 = pneg %p63
        $region14: #{tpu_custom_call.1} parent=11 // pred_check_branch
          %169 = sbr.rel (%p167) target = $region16
        $region15: #{tpu_custom_call.1} parent=11 // pred_region
          %s171 = ssub.s32 4096, 4096
          %172 = vsyncadd [#allocation6], %s171
          %s173 = sshll.u32 [#allocation5], 4
          %s174 = int_to_ptr.vmem [resolvable:$true] %s173
          %179 = dma.hbm_to_vmem [thread:$0]  %s1, 4096, %s174, [#allocation6], 128, 128, 8
        $region16: #{tpu_custom_call.1} parent=11 // pred_fallthru
          _
        // Predicated region
        $region17: #{tpu_custom_call.1} parent=11 // pred_check
          %p180 = pneg %p84
        $region18: #{tpu_custom_call.1} parent=11 // pred_check_branch
          %182 = sbr.rel (%p180) target = $region20
        $region19: #{tpu_custom_call.1} parent=11 // pred_region
          _
        $region20: #{tpu_custom_call.1} parent=11 // pred_fallthru
          _
        // Predicated region
        $region21: #{tpu_custom_call.1} parent=11 // pred_check
          %p183 = pneg %p105
        $region22: #{tpu_custom_call.1} parent=11 // pred_check_branch
          %185 = sbr.rel (%p183) target = $region24
        $region23: #{tpu_custom_call.1} parent=11 // pred_region
          _
        $region24: #{tpu_custom_call.1} parent=11 // pred_fallthru
          _
        // Predicated region
        $region25: #{tpu_custom_call.1} parent=11 // pred_check
          %p186 = pneg %p126
        $region26: #{tpu_custom_call.1} parent=11 // pred_check_branch
          %188 = sbr.rel (%p186) target = $region28
        $region27: #{tpu_custom_call.1} parent=11 // pred_region
          _
        $region28: #{tpu_custom_call.1} parent=11 // pred_fallthru
          _
      $region12: #{tpu_custom_call.1} parent=5 // pred_fallthru
        _
      %p189 = scmp.lt.s32.totalorder %s16, 2
      // Predicated region
      $region29: #{tpu_custom_call.1} parent=5 // pred_check
        %p190 = pneg %p189
      $region30: #{tpu_custom_call.1} parent=5 // pred_check_branch
        %192 = sbr.rel (%p190) target = $region32
      $region31: #{tpu_custom_call.1} parent=5 // pred_region
        // Predicated region
        $region33: #{tpu_custom_call.1} parent=31 // pred_check
          %p193 = pneg %p36
        $region34: #{tpu_custom_call.1} parent=31 // pred_check_branch
          %195 = sbr.rel (%p193) target = $region36
        $region35: #{tpu_custom_call.1} parent=31 // pred_region
          %s196 = sand.u32 %s26, 1
          %s197 = scalar_lea.sflag [#allocation4], %s196
          %s198 = sand.u32 %s26, 1
          %s199 = smul.addr %s198, 64
          %s200 = scalar_lea.vmem [#allocation3], %s199
          %s201 = smul.u32 4, %s16
          %s203 = ssub.s32 1024, 1024
          %204 = vsyncadd %s197, %s203
          %s205 = smul.addr %s201, 2
          %s206 = smul.addr %s205, 128
          %s207 = scalar_lea.hbm %s0, %s206
          %s208 = sshll.u32 %s200, 4
          %s209 = int_to_ptr.vmem [resolvable:$true] %s208
          %214 = dma.hbm_to_vmem [thread:$0]  %s207, 1024, %s209, %s197, 256, 256, 16
        $region36: #{tpu_custom_call.1} parent=31 // pred_fallthru
          _
      $region32: #{tpu_custom_call.1} parent=5 // pred_fallthru
        _
      %p215 = scmp.le.s32.totalorder 1, %s16
      %p216 = scmp.lt.s32.totalorder %s16, 3
      %p217 = pnand %p215, %p216
      %p218 = pneg %p217
      // Predicated region
      $region37: #{tpu_custom_call.1} parent=5 // pred_check
        _
      $region38: #{tpu_custom_call.1} parent=5 // pred_check_branch
        %220 = sbr.rel (%p217) target = $region40
      $region39: #{tpu_custom_call.1} parent=5 // pred_region
        %s221 = ssub.s32 %s16, 1
        %s222 = sand.u32 %s29, 1
        %s223 = scalar_lea.sflag [#allocation4], %s222
        %s224 = sand.u32 %s29, 1
        %s225 = smul.addr %s224, 64
        %s226 = scalar_lea.vmem [#allocation3], %s225
        // Predicated region
        $region41: #{tpu_custom_call.1} parent=39 // pred_check
          %p227 = pneg %p42
        $region42: #{tpu_custom_call.1} parent=39 // pred_check_branch
          %229 = sbr.rel (%p227) target = $region44
        $region43: #{tpu_custom_call.1} parent=39 // pred_region
          %230 = dma.done %s223, 1024
        $region44: #{tpu_custom_call.1} parent=39 // pred_fallthru
          _
        // Predicated region
        $region45: #{tpu_custom_call.1} parent=39 // pred_check
          %p231 = pneg %p63
        $region46: #{tpu_custom_call.1} parent=39 // pred_check_branch
          %233 = sbr.rel (%p231) target = $region48
        $region47: #{tpu_custom_call.1} parent=39 // pred_region
          %234 = dma.done [#allocation6], 4096
        $region48: #{tpu_custom_call.1} parent=39 // pred_fallthru
          _
        %s235 = sand.u32 %s29, 1
        %s236 = scalar_lea.sflag [#allocation4], %s235
        %s237 = sand.u32 %s29, 1
        %s238 = smul.addr %s237, 64
        %s239 = scalar_lea.vmem [#allocation3], %s238
        %p240 = pneg %p42
        %p241 = pneg %p39
        %p242 = pneg %p63
        %p243 = pneg %p60
        %p244 = pneg %p84
        %p245 = pneg %p81
        %p246 = pneg %p105
        %p247 = pneg %p102
        %p248 = pneg %p126
        %p249 = pneg %p123
        %p250 = pneg %p152
        %p251 = pneg %p149
        %s252 = smul.u32 4, %s21
        %p253 = scmp.lt.s32.totalorder %s252, 7
        %s254 = scalar_select %p253, %s252, 7
        %s255 = smul.addr %s254, 8
        %s256 = scalar_lea.vmem %s5, %s255
        %s257 = smul.u32 4, %s21
        %s258 = smul.u32 4, %s21
        %p259 = scmp.lt.s32.totalorder %s258, 7
        %s260 = scalar_select %p259, %s258, 7
        %s261 = smul.addr %s260, 8
        %s262 = scalar_lea.vmem %s5, %s261
        %s263 = smul.u32 4, %s21
        %v264 = vld [vmem:[%s226] sm:$0xff]
        %v265 = vld [vmem:[%s226 + $0x8] sm:$0xff]
        %v266 = vld [vmem:[%s226 + $0x10] sm:$0xff]
        %v267 = vld [vmem:[%s226 + $0x18] sm:$0xff]
        %v268 = vld [vmem:[%s226 + $0x20] sm:$0xff]
        %v269 = vld [vmem:[%s226 + $0x28] sm:$0xff]
        %v270 = vld [vmem:[%s226 + $0x30] sm:$0xff]
        %v271 = vld [vmem:[%s226 + $0x38] sm:$0xff]
        %v272 = vld [vmem:[#allocation5] sm:$0xff]
        %v273 = vld [vmem:[#allocation5 + $0x8] sm:$0xff]
        %v274 = vld [vmem:[#allocation5 + $0x10] sm:$0xff]
        %v275 = vld [vmem:[#allocation5 + $0x18] sm:$0xff]
        %v276 = vld [vmem:[#allocation5 + $0x20] sm:$0xff]
        %v277 = vld [vmem:[#allocation5 + $0x28] sm:$0xff]
        %v278 = vld [vmem:[#allocation5 + $0x30] sm:$0xff]
        %v279 = vld [vmem:[#allocation5 + $0x38] sm:$0xff]
        %v280 = vld [vmem:[#allocation5 + $0x40] sm:$0xff]
        %v281 = vld [vmem:[#allocation5 + $0x48] sm:$0xff]
        %v282 = vld [vmem:[#allocation5 + $0x50] sm:$0xff]
        %v283 = vld [vmem:[#allocation5 + $0x58] sm:$0xff]
        %v284 = vld [vmem:[#allocation5 + $0x60] sm:$0xff]
        %v285 = vld [vmem:[#allocation5 + $0x68] sm:$0xff]
        %v286 = vld [vmem:[#allocation5 + $0x70] sm:$0xff]
        %v287 = vld [vmem:[#allocation5 + $0x78] sm:$0xff]
        %v288 = vld [vmem:[#allocation5 + $0x80] sm:$0xff]
        %v289 = vld [vmem:[#allocation5 + $0x88] sm:$0xff]
        %v290 = vld [vmem:[#allocation5 + $0x90] sm:$0xff]
        %v291 = vld [vmem:[#allocation5 + $0x98] sm:$0xff]
        %v292 = vld [vmem:[#allocation5 + $0xa0] sm:$0xff]
        %v293 = vld [vmem:[#allocation5 + $0xa8] sm:$0xff]
        %v294 = vld [vmem:[#allocation5 + $0xb0] sm:$0xff]
        %v295 = vld [vmem:[#allocation5 + $0xb8] sm:$0xff]
        %v296 = vld [vmem:[#allocation5 + $0xc0] sm:$0xff]
        %v297 = vld [vmem:[#allocation5 + $0xc8] sm:$0xff]
        %v298 = vld [vmem:[#allocation5 + $0xd0] sm:$0xff]
        %v299 = vld [vmem:[#allocation5 + $0xd8] sm:$0xff]
        %v300 = vld [vmem:[#allocation5 + $0xe0] sm:$0xff]
        %v301 = vld [vmem:[#allocation5 + $0xe8] sm:$0xff]
        %v302 = vld [vmem:[#allocation5 + $0xf0] sm:$0xff]
        %v303 = vld [vmem:[#allocation5 + $0xf8] sm:$0xff]
        %v304 = vld [vmem:[%s2] sm:$0x1]
        %v306 = vlaneseq
        %v307 = vshrl.u32 %v306, 7
        %v308 = vsub.s32 0, %v307
        %v309 = vrot.slane %v304, %v308
        %311 = vmatprep.subr.mxu0 0.0
        %312 = vmatpush1.msra.mxu0 %v272
        %313 = vmatprep.subr.mxu0 0.0
        %314 = vmatpush1.msra.mxu0 %v273
        %315 = vmatprep.subr.mxu0 0.0
        %316 = vmatpush1.msra.mxu0 %v274
        %317 = vmatprep.subr.mxu0 0.0
        %318 = vmatpush1.msra.mxu0 %v275
        %319 = vmatprep.subr.mxu0 0.0
        %320 = vmatpush1.msra.mxu0 %v276
        %321 = vmatprep.subr.mxu0 0.0
        %322 = vmatpush1.msra.mxu0 %v277
        %323 = vmatprep.subr.mxu0 0.0
        %324 = vmatpush1.msra.mxu0 %v278
        %325 = vmatprep.subr.mxu0 0.0
        %326 = vmatpush1.msra.mxu0 %v279
        %327 = vmatprep.subr.mxu0 0.0
        %328 = vmatpush1.msra.mxu0 %v280
        %329 = vmatprep.subr.mxu0 0.0
        %330 = vmatpush1.msra.mxu0 %v281
        %331 = vmatprep.subr.mxu0 0.0
        %332 = vmatpush1.msra.mxu0 %v282
        %333 = vmatprep.subr.mxu0 0.0
        %334 = vmatpush1.msra.mxu0 %v283
        %335 = vmatprep.subr.mxu0 0.0
        %336 = vmatpush1.msra.mxu0 %v284
        %337 = vmatprep.subr.mxu0 0.0
        %338 = vmatpush1.msra.mxu0 %v285
        %339 = vmatprep.subr.mxu0 0.0
        %340 = vmatpush1.msra.mxu0 %v286
        %341 = vmatprep.subr.mxu0 0.0
        %342 = vmatpush1.msra.mxu0 %v287
        %343 = vmatprep.subr.mxu0 0.0
        %344 = vmatpush1.msra.mxu0 %v288
        %345 = vmatprep.subr.mxu0 0.0
        %346 = vmatpush1.msra.mxu0 %v289
        %347 = vmatprep.subr.mxu0 0.0
        %348 = vmatpush1.msra.mxu0 %v290
        %349 = vmatprep.subr.mxu0 0.0
        %350 = vmatpush1.msra.mxu0 %v291
        %351 = vmatprep.subr.mxu0 0.0
        %352 = vmatpush1.msra.mxu0 %v292
        %353 = vmatprep.subr.mxu0 0.0
        %354 = vmatpush1.msra.mxu0 %v293
        %355 = vmatprep.subr.mxu0 0.0
        %356 = vmatpush1.msra.mxu0 %v294
        %357 = vmatprep.subr.mxu0 0.0
        %358 = vmatpush1.msra.mxu0 %v295
        %359 = vmatprep.subr.mxu0 0.0
        %360 = vmatpush1.msra.mxu0 %v296
        %361 = vmatprep.subr.mxu0 0.0
        %362 = vmatpush1.msra.mxu0 %v297
        %363 = vmatprep.subr.mxu0 0.0
        %364 = vmatpush1.msra.mxu0 %v298
        %365 = vmatprep.subr.mxu0 0.0
        %366 = vmatpush1.msra.mxu0 %v299
        %367 = vmatprep.subr.mxu0 0.0
        %368 = vmatpush1.msra.mxu0 %v300
        %369 = vmatprep.subr.mxu0 0.0
        %370 = vmatpush1.msra.mxu0 %v301
        %371 = vmatprep.subr.mxu0 0.0
        %372 = vmatpush1.msra.mxu0 %v302
        %373 = vmatprep.subr.mxu0 0.0
        %374 = vmatpush1.msra.mxu0 %v303
        %375 = vmatprep.mubr.f32.mxu0 %v265
        %376 = vmatmul.mubr.f32.gmra.mrb[0].mxu0 %v264
        %v377 = vpop.f32.mrb[0].mxu0
        %v378 = vadd.f32 %v309, %v377
        %v379 = vpop.f32.mrb[0].mxu0
        %380 = vmatprep.mubr.f32.mxu0 %v267
        %381 = vmatmul.mubr.f32.gmra.mrb[0].mxu0 %v266
        %v382 = vpop.f32.mrb[0].mxu0
        %v383 = vadd.f32 %v309, %v382
        %v384 = vpop.f32.mrb[0].mxu0
        %385 = vmatprep.mubr.f32.mxu0 %v269
        %386 = vmatmul.mubr.f32.gmra.mrb[0].mxu0 %v268
        %v387 = vpop.f32.mrb[0].mxu0
        %v388 = vadd.f32 %v309, %v387
        %v389 = vpop.f32.mrb[0].mxu0
        %390 = vmatprep.mubr.f32.mxu0 %v271
        %391 = vmatmul.mubr.f32.gmra.mrb[0].mxu0 %v270
        %v392 = vpop.f32.mrb[0].mxu0
        %v393 = vadd.f32 %v309, %v392
        %v394 = vpop.f32.mrb[0].mxu0
        %395 = vdwg.mxu0
        %vm396 = vcmp.gt.f32.partialorder %v378, 0.0
        %vm397 = vcmp.gt.f32.partialorder %v383, 0.0
        %vm398 = vcmp.gt.f32.partialorder %v388, 0.0
        %vm399 = vcmp.gt.f32.partialorder %v393, 0.0
        %v400 = vmul.f32 %v378, 0.01
        %v401 = vmul.f32 %v383, 0.01
        %v402 = vmul.f32 %v388, 0.01
        %v403 = vmul.f32 %v393, 0.01
        %v404 = vsel %vm396, %v378, %v400
        %v405 = vsel %vm397, %v383, %v401
        %v406 = vsel %vm398, %v388, %v402
        %v407 = vsel %vm399, %v393, %v403
        %v408 = vld [vmem:[%s3] sm:$0x1]
        %v410 = vlaneseq
        %v411 = vshrl.u32 %v410, 7
        %v412 = vsub.s32 0, %v411
        %v413 = vrot.slane %v408, %v412
        %v415 = vmul.f32 %v404, %v413
        %v416 = vmul.f32 %v405, %v413
        %v417 = vmul.f32 %v406, %v413
        %v418 = vmul.f32 %v407, %v413
        %419 = vadd.xlane.f32.xlu0 %v415
        %v420 = vpop.xlane.xlu0 %419
        %421 = vadd.xlane.f32.xlu0 %v416
        %v422 = vpop.xlane.xlu0 %421
        %423 = vadd.xlane.f32.xlu0 %v417
        %v424 = vpop.xlane.xlu0 %423
        %425 = vadd.xlane.f32.xlu0 %v418
        %v426 = vpop.xlane.xlu0 %425
        %s427 = sld [smem:[#allocation2]]
        %v428 = vstv %s427
        %v429 = vadd.f32 %v420, %v428
        %v430 = vadd.f32 %v422, %v428
        %v431 = vadd.f32 %v424, %v428
        %v432 = vadd.f32 %v426, %v428
        %v433 = vand.u32 2147483647, %v429
        %v434 = vand.u32 2147483647, %v430
        %v435 = vand.u32 2147483647, %v431
        %v436 = vand.u32 2147483647, %v432
        %v437 = vsub.f32 0.0, %v433
        %v438 = vsub.f32 0.0, %v434
        %v439 = vsub.f32 0.0, %v435
        %v440 = vsub.f32 0.0, %v436
        %v441 = vmul.f32 %v437, 1.442695
        %v442 = vpow.pop %v441
        %v443 = vmul.f32 %v438, 1.442695
        %v444 = vpow.pop %v443
        %v445 = vmul.f32 %v439, 1.442695
        %v446 = vpow.pop %v445
        %v447 = vmul.f32 %v440, 1.442695
        %v448 = vpow.pop %v447
        %vm449 = vcmp.ge.f32.partialorder %v429, 0.0
        %vm450 = vcmp.ge.f32.partialorder %v430, 0.0
        %vm451 = vcmp.ge.f32.partialorder %v431, 0.0
        %vm452 = vcmp.ge.f32.partialorder %v432, 0.0
        %v453 = vadd.f32 %v442, 1.0
        %v454 = vadd.f32 %v444, 1.0
        %v455 = vadd.f32 %v446, 1.0
        %v456 = vadd.f32 %v448, 1.0
        %v457 = vrcp.pop %v453
        %v458 = vmul.f32 1.0, %v457
        %v459 = vrcp.pop %v454
        %v460 = vmul.f32 1.0, %v459
        %v461 = vrcp.pop %v455
        %v462 = vmul.f32 1.0, %v461
        %v463 = vrcp.pop %v456
        %v464 = vmul.f32 1.0, %v463
        %v465 = vmul.f32 %v442, %v457
        %v466 = vmul.f32 %v444, %v459
        %v467 = vmul.f32 %v446, %v461
        %v468 = vmul.f32 %v448, %v463
        %v469 = vsel %vm449, %v458, %v465
        %v470 = vsel %vm450, %v460, %v466
        %v471 = vsel %vm451, %v462, %v467
        %v472 = vsel %vm452, %v464, %v468
        %vm473 = vcmask 7168
        %474 = vst.msk [vmem:[%s262] sm:$0xff] %vm473, %v469
        %475 = vst.msk [vmem:[%s262 + $0x8] sm:$0xff] %vm473, %v470
        %476 = vst.msk [vmem:[%s262 + $0x10] sm:$0xff] %vm473, %v471
        %477 = vst.msk [vmem:[%s262 + $0x18] sm:$0xff] %vm473, %v472
        %s478 = smul.u32 4, %s21
        %p479 = scmp.lt.s32.totalorder %s478, 7
        %s480 = scalar_select %p479, %s478, 7
        %s481 = smul.addr %s480, 8
        %s482 = scalar_lea.vmem %s5, %s481
        // Predicated region
        $region49: #{tpu_custom_call.1} parent=39 // pred_check
          %p483 = pneg %p149
        $region50: #{tpu_custom_call.1} parent=39 // pred_check_branch
          %485 = sbr.rel (%p483) target = $region52
        $region51: #{tpu_custom_call.1} parent=39 // pred_region
          %s486 = smul.u32 4, %s21
        $region52: #{tpu_custom_call.1} parent=39 // pred_fallthru
          _
      $region40: #{tpu_custom_call.1} parent=5 // pred_fallthru
        _
      %p487 = scmp.le.s32.totalorder 2, %s16
      // Predicated region
      $region53: #{tpu_custom_call.1} parent=5 // pred_check
        %p488 = pneg %p487
      $region54: #{tpu_custom_call.1} parent=5 // pred_check_branch
        %490 = sbr.rel (%p488) target = $region56
      $region55: #{tpu_custom_call.1} parent=5 // pred_region
        %s491 = ssub.s32 %s16, 2
        // Predicated region
        $region57: #{tpu_custom_call.1} parent=55 // pred_check
          %p492 = pneg %p155
        $region58: #{tpu_custom_call.1} parent=55 // pred_check_branch
          %494 = sbr.rel (%p492) target = $region60
        $region59: #{tpu_custom_call.1} parent=55 // pred_region
          %s495 = smul.u32 4, %s22
          %p496 = scmp.lt.s32.totalorder %s495, 7
          %s497 = scalar_select %p496, %s495, 7
          %s498 = smul.addr %s497, 8
          %s499 = scalar_lea.vmem %s5, %s498
        $region60: #{tpu_custom_call.1} parent=55 // pred_fallthru
          _
      $region56: #{tpu_custom_call.1} parent=5 // pred_fallthru
        _
    $region6: #{tpu_custom_call.1} parent=1 // loop_footer
      %s20 = sadd.s32 1, %s16
    $region7: #{tpu_custom_call.1} parent=1 // loop_footer_branch
      %15 = sbr.rel target = $region3
    $region8: #{tpu_custom_call.1} parent=1 // loop_exit
      _
    %500 = vsyncpa [#allocation4], 1
    %s501 = scalar_lea.sflag [#allocation4], 1
    %502 = vsyncpa %s501, 1
    %503 = vsyncpa [#allocation6], 1

// kernel: tpu_custom_call.1
$region0: #{tpu_custom_call.1}
  #allocation0 [shape = 'u32[]', space=smem, size = 0x4, offset = 0x4, fixed_abs, tag = 'smem constant byte address 0x4 - core index']
  #allocation1 [shape = 'u32[144,128]{1,0:T(1,128)}', space=vmem, size = 0x12000, scoped, tag = 'internal scratch']
  #allocation2 [shape = 'f32[1]{0:T(128)S(6)}', space=smem, size = 0x200, scoped, tag = 'scoped memory for tpu_custom_call.1']
  %s0 = inlined_call_operand.hbm [shape: f32[64,256], index: 0, kind: input, shape index: {}]
  %s1 = inlined_call_operand.hbm [shape: f32[256,128], index: 1, kind: input, shape index: {}]
  %s2 = inlined_call_operand.vmem [shape: f32[1,128], index: 2, kind: input, shape index: {}]
  %s3 = inlined_call_operand.vmem [shape: f32[1,128], index: 3, kind: input, shape index: {}]
  %s4 = inlined_call_operand.<no memory space> [shape: f32[1], index: 4, kind: input, shape index: {}]
  %s5 = inlined_call_operand.vmem [shape: f32[64,1], index: 5, kind: output, shape index: {}]
  %s6 = sld [smem:[#allocation0]]
  $region61: #{tpu_custom_call.1} parent=0
    _
  %s8 = ssub.s32 1, %s6
  %s9 = scalar_select 0, %s8, %s6
  %10 = sst [smem:[#allocation2]] %s4
  $region1: #{tpu_custom_call.1} parent=0
    #allocation3 [shape = 'u8[65536]{0}', space=vmem, size = 0x10000, scoped, tag = 'input window, operand 0']
    #allocation4 [shape = 's32[2]{0}', space=sflag, size = 0x8, scoped, tag = 'scoped memory for tpu_custom_call.1']
    #allocation5 [shape = 'u8[131072]{0}', space=vmem, size = 0x20000, scoped, tag = 'input window, operand 1, single buffered']
    #allocation6 [shape = 's32[1]{0}', space=sflag, size = 0x4, scoped, tag = 'scoped memory for tpu_custom_call.1']
    %11 = vsyncpa [#allocation4], 0
    %s12 = scalar_lea.sflag [#allocation4], 1
    %13 = vsyncpa %s12, 0
    %14 = vsyncpa [#allocation6], 0
    loop: start=0, step=1, limit=4
    $region2: #{tpu_custom_call.1} parent=1 // loop_pre_header
      _
    $region3: #{tpu_custom_call.1} parent=1 // loop_header
      %s16 = sphi 0, %s20
      %p17 = scmp.ge.s32.totalorder %s16, 4
      %s26 = sphi 0, %s28
      %s29 = sphi 0, %s26
      %s30 = sphi 0, %s29
      %s46 = sphi 0, %s30
      %s50 = sphi 0, %s50
      %s52 = sphi 0, %s50
      %s53 = sphi 0, %s52
      %s67 = sphi 0, %s53
      %s71 = sphi 0, %s71
      %s73 = sphi 0, %s71
      %s74 = sphi 0, %s73
      %s88 = sphi 0, %s74
      %s92 = sphi 0, %s92
      %s94 = sphi 0, %s92
      %s95 = sphi 0, %s94
      %s109 = sphi 0, %s95
      %s113 = sphi 0, %s113
      %s115 = sphi 0, %s113
      %s116 = sphi 0, %s115
      %s130 = sphi 0, %s116
      %s136 = sphi 0, %s138
      %s139 = sphi 0, %s136
      %s140 = sphi 0, %s139
      %s156 = sphi 0, %s140
    $region4: #{tpu_custom_call.1} parent=1 // loop_header_branch
      %19 = sbr.rel (%p17) target = $region8
    $region5: #{tpu_custom_call.1} parent=1 // loop_body
      %s21 = ssub.s32 %s16, 1
      %s22 = ssub.s32 %s16, 2
      %s23 = sadd.s32 %s16, 1
      %s24 = ssub.s32 %s16, %s23
      %p25 = scmp.eq.s32.totalorder %s24, 0
      %s27 = sadd.s32 %s26, 1
      %s28 = scalar_select %p25, %s26, %s27
      %p31 = pneg %p25
      %p32 = scmp.eq.s32.totalorder %s16, 1
      %p33 = por %p31, %p32
      %p34 = scmp.ne.s32.totalorder %s26, %s29
      %p35 = scmp.eq.s32.totalorder %s16, 0
      %p36 = por %p34, %p35
      %p37 = scmp.ne.s32.totalorder %s26, %s29
      %p38 = scmp.eq.s32.totalorder %s21, 1
      %p39 = por %p37, %p38
      %p40 = scmp.ne.s32.totalorder %s29, %s30
      %p41 = scmp.eq.s32.totalorder %s21, 0
      %p42 = por %p40, %p41
      %p43 = scmp.ne.s32.totalorder %s29, %s30
      %p44 = scmp.eq.s32.totalorder %s22, 1
      %p45 = por %p43, %p44
      %p47 = scmp.ne.s32.totalorder %s30, %s46
      %p48 = scmp.eq.s32.totalorder %s22, 0
      %p49 = por %p47, %p48
      %s51 = sadd.s32 %s50, 1
      %p54 = scmp.eq.s32.totalorder %s16, 1
      %p55 = scmp.ne.s32.totalorder %s50, %s52
      %p56 = scmp.eq.s32.totalorder %s16, 0
      %p57 = por %p55, %p56
      %p58 = scmp.ne.s32.totalorder %s50, %s52
      %p59 = scmp.eq.s32.totalorder %s21, 1
      %p60 = por %p58, %p59
      %p61 = scmp.ne.s32.totalorder %s52, %s53
      %p62 = scmp.eq.s32.totalorder %s21, 0
      %p63 = por %p61, %p62
      %p64 = scmp.ne.s32.totalorder %s52, %s53
      %p65 = scmp.eq.s32.totalorder %s22, 1
      %p66 = por %p64, %p65
      %p68 = scmp.ne.s32.totalorder %s53, %s67
      %p69 = scmp.eq.s32.totalorder %s22, 0
      %p70 = por %p68, %p69
      %s72 = sadd.s32 %s71, 1
      %p75 = scmp.eq.s32.totalorder %s16, 1
      %p76 = scmp.ne.s32.totalorder %s71, %s73
      %p77 = scmp.eq.s32.totalorder %s16, 0
      %p78 = por %p76, %p77
      %p79 = scmp.ne.s32.totalorder %s71, %s73
      %p80 = scmp.eq.s32.totalorder %s21, 1
      %p81 = por %p79, %p80
      %p82 = scmp.ne.s32.totalorder %s73, %s74
      %p83 = scmp.eq.s32.totalorder %s21, 0
      %p84 = por %p82, %p83
      %p85 = scmp.ne.s32.totalorder %s73, %s74
      %p86 = scmp.eq.s32.totalorder %s22, 1
      %p87 = por %p85, %p86
      %p89 = scmp.ne.s32.totalorder %s74, %s88
      %p90 = scmp.eq.s32.totalorder %s22, 0
      %p91 = por %p89, %p90
      %s93 = sadd.s32 %s92, 1
      %p96 = scmp.eq.s32.totalorder %s16, 1
      %p97 = scmp.ne.s32.totalorder %s92, %s94
      %p98 = scmp.eq.s32.totalorder %s16, 0
      %p99 = por %p97, %p98
      %p100 = scmp.ne.s32.totalorder %s92, %s94
      %p101 = scmp.eq.s32.totalorder %s21, 1
      %p102 = por %p100, %p101
      %p103 = scmp.ne.s32.totalorder %s94, %s95
      %p104 = scmp.eq.s32.totalorder %s21, 0
      %p105 = por %p103, %p104
      %p106 = scmp.ne.s32.totalorder %s94, %s95
      %p107 = scmp.eq.s32.totalorder %s22, 1
      %p108 = por %p106, %p107
      %p110 = scmp.ne.s32.totalorder %s95, %s109
      %p111 = scmp.eq.s32.totalorder %s22, 0
      %p112 = por %p110, %p111
      %s114 = sadd.s32 %s113, 1
      %p117 = scmp.eq.s32.totalorder %s16, 1
      %p118 = scmp.ne.s32.totalorder %s113, %s115
      %p119 = scmp.eq.s32.totalorder %s16, 0
      %p120 = por %p118, %p119
      %p121 = scmp.ne.s32.totalorder %s113, %s115
      %p122 = scmp.eq.s32.totalorder %s21, 1
      %p123 = por %p121, %p122
      %p124 = scmp.ne.s32.totalorder %s115, %s116
      %p125 = scmp.eq.s32.totalorder %s21, 0
      %p126 = por %p124, %p125
      %p127 = scmp.ne.s32.totalorder %s115, %s116
      %p128 = scmp.eq.s32.totalorder %s22, 1
      %p129 = por %p127, %p128
      %p131 = scmp.ne.s32.totalorder %s116, %s130
      %p132 = scmp.eq.s32.totalorder %s22, 0
      %p133 = por %p131, %p132
      %s134 = ssub.s32 %s16, %s23
      %p135 = scmp.eq.s32.totalorder %s134, 0
      %s137 = sadd.s32 %s136, 1
      %s138 = scalar_select %p135, %s136, %s137
      %p141 = pneg %p135
      %p142 = scmp.eq.s32.totalorder %s16, 1
      %p143 = por %p141, %p142
      %p144 = scmp.ne.s32.totalorder %s136, %s139
      %p145 = scmp.eq.s32.totalorder %s16, 0
      %p146 = por %p144, %p145
      %p147 = scmp.ne.s32.totalorder %s136, %s139
      %p148 = scmp.eq.s32.totalorder %s21, 1
      %p149 = por %p147, %p148
      %p150 = scmp.ne.s32.totalorder %s139, %s140
      %p151 = scmp.eq.s32.totalorder %s21, 0
      %p152 = por %p150, %p151
      %p153 = scmp.ne.s32.totalorder %s139, %s140
      %p154 = scmp.eq.s32.totalorder %s22, 1
      %p155 = por %p153, %p154
      %p157 = scmp.ne.s32.totalorder %s140, %s156
      %p158 = scmp.eq.s32.totalorder %s22, 0
      %p159 = por %p157, %p158
      %p160 = scmp.le.s32.totalorder 1, %s16
      %p161 = scmp.lt.s32.totalorder %s16, 3
      %p162 = pnand %p160, %p161
      %p163 = pneg %p162
      // Predicated region
      $region9: #{tpu_custom_call.1} parent=5 // pred_check
        _
      $region10: #{tpu_custom_call.1} parent=5 // pred_check_branch
        %165 = sbr.rel (%p162) target = $region12
      $region11: #{tpu_custom_call.1} parent=5 // pred_region
        %s166 = ssub.s32 %s16, 1
        // Predicated region
        $region13: #{tpu_custom_call.1} parent=11 // pred_check
          %p167 = pneg %p63
        $region14: #{tpu_custom_call.1} parent=11 // pred_check_branch
          %169 = sbr.rel (%p167) target = $region16
        $region15: #{tpu_custom_call.1} parent=11 // pred_region
          %s171 = ssub.s32 4096, 4096
          %172 = vsyncadd [#allocation6], %s171
          %s173 = sshll.u32 [#allocation5], 4
          %s174 = int_to_ptr.vmem [resolvable:$true] %s173
          %179 = dma.hbm_to_vmem [thread:$0]  %s1, 4096, %s174, [#allocation6], 128, 128, 8
        $region16: #{tpu_custom_call.1} parent=11 // pred_fallthru
          _
        // Predicated region
        $region17: #{tpu_custom_call.1} parent=11 // pred_check
          %p180 = pneg %p84
        $region18: #{tpu_custom_call.1} parent=11 // pred_check_branch
          %182 = sbr.rel (%p180) target = $region20
        $region19: #{tpu_custom_call.1} parent=11 // pred_region
          _
        $region20: #{tpu_custom_call.1} parent=11 // pred_fallthru
          _
        // Predicated region
        $region21: #{tpu_custom_call.1} parent=11 // pred_check
          %p183 = pneg %p105
        $region22: #{tpu_custom_call.1} parent=11 // pred_check_branch
          %185 = sbr.rel (%p183) target = $region24
        $region23: #{tpu_custom_call.1} parent=11 // pred_region
          _
        $region24: #{tpu_custom_call.1} parent=11 // pred_fallthru
          _
        // Predicated region
        $region25: #{tpu_custom_call.1} parent=11 // pred_check
          %p186 = pneg %p126
        $region26: #{tpu_custom_call.1} parent=11 // pred_check_branch
          %188 = sbr.rel (%p186) target = $region28
        $region27: #{tpu_custom_call.1} parent=11 // pred_region
          _
        $region28: #{tpu_custom_call.1} parent=11 // pred_fallthru
          _
      $region12: #{tpu_custom_call.1} parent=5 // pred_fallthru
        _
      %p189 = scmp.lt.s32.totalorder %s16, 2
      // Predicated region
      $region29: #{tpu_custom_call.1} parent=5 // pred_check
        %p190 = pneg %p189
      $region30: #{tpu_custom_call.1} parent=5 // pred_check_branch
        %192 = sbr.rel (%p190) target = $region32
      $region31: #{tpu_custom_call.1} parent=5 // pred_region
        // Predicated region
        $region33: #{tpu_custom_call.1} parent=31 // pred_check
          %p193 = pneg %p36
        $region34: #{tpu_custom_call.1} parent=31 // pred_check_branch
          %195 = sbr.rel (%p193) target = $region36
        $region35: #{tpu_custom_call.1} parent=31 // pred_region
          %s196 = sand.u32 %s26, 1
          %s197 = scalar_lea.sflag [#allocation4], %s196
          %s198 = sand.u32 %s26, 1
          %s199 = smul.addr %s198, 64
          %s200 = scalar_lea.vmem [#allocation3], %s199
          %s201 = smul.u32 4, %s16
          %s203 = ssub.s32 1024, 1024
          %204 = vsyncadd %s197, %s203
          %s205 = smul.addr %s201, 2
          %s206 = smul.addr %s205, 128
          %s207 = scalar_lea.hbm %s0, %s206
          %s208 = sshll.u32 %s200, 4
          %s209 = int_to_ptr.vmem [resolvable:$true] %s208
          %214 = dma.hbm_to_vmem [thread:$0]  %s207, 1024, %s209, %s197, 256, 256, 16
        $region36: #{tpu_custom_call.1} parent=31 // pred_fallthru
          _
      $region32: #{tpu_custom_call.1} parent=5 // pred_fallthru
        _
      %p215 = scmp.le.s32.totalorder 1, %s16
      %p216 = scmp.lt.s32.totalorder %s16, 3
      %p217 = pnand %p215, %p216
      %p218 = pneg %p217
      // Predicated region
      $region37: #{tpu_custom_call.1} parent=5 // pred_check
        _
      $region38: #{tpu_custom_call.1} parent=5 // pred_check_branch
        %220 = sbr.rel (%p217) target = $region40
      $region39: #{tpu_custom_call.1} parent=5 // pred_region
        %s221 = ssub.s32 %s16, 1
        %s222 = sand.u32 %s29, 1
        %s223 = scalar_lea.sflag [#allocation4], %s222
        %s224 = sand.u32 %s29, 1
        %s225 = smul.addr %s224, 64
        %s226 = scalar_lea.vmem [#allocation3], %s225
        // Predicated region
        $region41: #{tpu_custom_call.1} parent=39 // pred_check
          %p227 = pneg %p42
        $region42: #{tpu_custom_call.1} parent=39 // pred_check_branch
          %229 = sbr.rel (%p227) target = $region44
        $region43: #{tpu_custom_call.1} parent=39 // pred_region
          %230 = dma.done %s223, 1024
        $region44: #{tpu_custom_call.1} parent=39 // pred_fallthru
          _
        // Predicated region
        $region45: #{tpu_custom_call.1} parent=39 // pred_check
          %p231 = pneg %p63
        $region46: #{tpu_custom_call.1} parent=39 // pred_check_branch
          %233 = sbr.rel (%p231) target = $region48
        $region47: #{tpu_custom_call.1} parent=39 // pred_region
          %234 = dma.done [#allocation6], 4096
        $region48: #{tpu_custom_call.1} parent=39 // pred_fallthru
          _
        %s235 = sand.u32 %s29, 1
        %s236 = scalar_lea.sflag [#allocation4], %s235
        %s237 = sand.u32 %s29, 1
        %s238 = smul.addr %s237, 64
        %s239 = scalar_lea.vmem [#allocation3], %s238
        %p240 = pneg %p42
        %p241 = pneg %p39
        %p242 = pneg %p63
        %p243 = pneg %p60
        %p244 = pneg %p84
        %p245 = pneg %p81
        %p246 = pneg %p105
        %p247 = pneg %p102
        %p248 = pneg %p126
        %p249 = pneg %p123
        %p250 = pneg %p152
        %p251 = pneg %p149
        %s252 = smul.u32 4, %s21
        %p253 = scmp.lt.s32.totalorder %s252, 7
        %s254 = scalar_select %p253, %s252, 7
        %s255 = smul.addr %s254, 8
        %s256 = scalar_lea.vmem %s5, %s255
        %s257 = smul.u32 4, %s21
        %s258 = smul.u32 4, %s21
        %p259 = scmp.lt.s32.totalorder %s258, 7
        %s260 = scalar_select %p259, %s258, 7
        %s261 = smul.addr %s260, 8
        %s262 = scalar_lea.vmem %s5, %s261
        %s263 = smul.u32 4, %s21
        %v264 = vld [vmem:[%s226] sm:$0xff]
        %v265 = vld [vmem:[%s226 + $0x8] sm:$0xff]
        %v266 = vld [vmem:[%s226 + $0x10] sm:$0xff]
        %v267 = vld [vmem:[%s226 + $0x18] sm:$0xff]
        %v268 = vld [vmem:[%s226 + $0x20] sm:$0xff]
        %v269 = vld [vmem:[%s226 + $0x28] sm:$0xff]
        %v270 = vld [vmem:[%s226 + $0x30] sm:$0xff]
        %v271 = vld [vmem:[%s226 + $0x38] sm:$0xff]
        %v272 = vld [vmem:[#allocation5] sm:$0xff]
        %v273 = vld [vmem:[#allocation5 + $0x8] sm:$0xff]
        %v274 = vld [vmem:[#allocation5 + $0x10] sm:$0xff]
        %v275 = vld [vmem:[#allocation5 + $0x18] sm:$0xff]
        %v276 = vld [vmem:[#allocation5 + $0x20] sm:$0xff]
        %v277 = vld [vmem:[#allocation5 + $0x28] sm:$0xff]
        %v278 = vld [vmem:[#allocation5 + $0x30] sm:$0xff]
        %v279 = vld [vmem:[#allocation5 + $0x38] sm:$0xff]
        %v280 = vld [vmem:[#allocation5 + $0x40] sm:$0xff]
        %v281 = vld [vmem:[#allocation5 + $0x48] sm:$0xff]
        %v282 = vld [vmem:[#allocation5 + $0x50] sm:$0xff]
        %v283 = vld [vmem:[#allocation5 + $0x58] sm:$0xff]
        %v284 = vld [vmem:[#allocation5 + $0x60] sm:$0xff]
        %v285 = vld [vmem:[#allocation5 + $0x68] sm:$0xff]
        %v286 = vld [vmem:[#allocation5 + $0x70] sm:$0xff]
        %v287 = vld [vmem:[#allocation5 + $0x78] sm:$0xff]
        %v288 = vld [vmem:[#allocation5 + $0x80] sm:$0xff]
        %v289 = vld [vmem:[#allocation5 + $0x88] sm:$0xff]
        %v290 = vld [vmem:[#allocation5 + $0x90] sm:$0xff]
        %v291 = vld [vmem:[#allocation5 + $0x98] sm:$0xff]
        %v292 = vld [vmem:[#allocation5 + $0xa0] sm:$0xff]
        %v293 = vld [vmem:[#allocation5 + $0xa8] sm:$0xff]
        %v294 = vld [vmem:[#allocation5 + $0xb0] sm:$0xff]
        %v295 = vld [vmem:[#allocation5 + $0xb8] sm:$0xff]
        %v296 = vld [vmem:[#allocation5 + $0xc0] sm:$0xff]
        %v297 = vld [vmem:[#allocation5 + $0xc8] sm:$0xff]
        %v298 = vld [vmem:[#allocation5 + $0xd0] sm:$0xff]
        %v299 = vld [vmem:[#allocation5 + $0xd8] sm:$0xff]
        %v300 = vld [vmem:[#allocation5 + $0xe0] sm:$0xff]
        %v301 = vld [vmem:[#allocation5 + $0xe8] sm:$0xff]
        %v302 = vld [vmem:[#allocation5 + $0xf0] sm:$0xff]
        %v303 = vld [vmem:[#allocation5 + $0xf8] sm:$0xff]
        %v304 = vld [vmem:[%s2] sm:$0x1]
        %v306 = vlaneseq
        %v307 = vshrl.u32 %v306, 7
        %v308 = vsub.s32 0, %v307
        %v309 = vrot.slane %v304, %v308
        %311 = vmatprep.subr.mxu0 0.0
        %312 = vmatpush1.msra.mxu0 %v272
        %313 = vmatprep.subr.mxu0 0.0
        %314 = vmatpush1.msra.mxu0 %v273
        %315 = vmatprep.subr.mxu0 0.0
        %316 = vmatpush1.msra.mxu0 %v274
        %317 = vmatprep.subr.mxu0 0.0
        %318 = vmatpush1.msra.mxu0 %v275
        %319 = vmatprep.subr.mxu0 0.0
        %320 = vmatpush1.msra.mxu0 %v276
        %321 = vmatprep.subr.mxu0 0.0
        %322 = vmatpush1.msra.mxu0 %v277
        %323 = vmatprep.subr.mxu0 0.0
        %324 = vmatpush1.msra.mxu0 %v278
        %325 = vmatprep.subr.mxu0 0.0
        %326 = vmatpush1.msra.mxu0 %v279
        %327 = vmatprep.subr.mxu0 0.0
        %328 = vmatpush1.msra.mxu0 %v280
        %329 = vmatprep.subr.mxu0 0.0
        %330 = vmatpush1.msra.mxu0 %v281
        %331 = vmatprep.subr.mxu0 0.0
        %332 = vmatpush1.msra.mxu0 %v282
        %333 = vmatprep.subr.mxu0 0.0
        %334 = vmatpush1.msra.mxu0 %v283
        %335 = vmatprep.subr.mxu0 0.0
        %336 = vmatpush1.msra.mxu0 %v284
        %337 = vmatprep.subr.mxu0 0.0
        %338 = vmatpush1.msra.mxu0 %v285
        %339 = vmatprep.subr.mxu0 0.0
        %340 = vmatpush1.msra.mxu0 %v286
        %341 = vmatprep.subr.mxu0 0.0
        %342 = vmatpush1.msra.mxu0 %v287
        %343 = vmatprep.subr.mxu0 0.0
        %344 = vmatpush1.msra.mxu0 %v288
        %345 = vmatprep.subr.mxu0 0.0
        %346 = vmatpush1.msra.mxu0 %v289
        %347 = vmatprep.subr.mxu0 0.0
        %348 = vmatpush1.msra.mxu0 %v290
        %349 = vmatprep.subr.mxu0 0.0
        %350 = vmatpush1.msra.mxu0 %v291
        %351 = vmatprep.subr.mxu0 0.0
        %352 = vmatpush1.msra.mxu0 %v292
        %353 = vmatprep.subr.mxu0 0.0
        %354 = vmatpush1.msra.mxu0 %v293
        %355 = vmatprep.subr.mxu0 0.0
        %356 = vmatpush1.msra.mxu0 %v294
        %357 = vmatprep.subr.mxu0 0.0
        %358 = vmatpush1.msra.mxu0 %v295
        %359 = vmatprep.subr.mxu0 0.0
        %360 = vmatpush1.msra.mxu0 %v296
        %361 = vmatprep.subr.mxu0 0.0
        %362 = vmatpush1.msra.mxu0 %v297
        %363 = vmatprep.subr.mxu0 0.0
        %364 = vmatpush1.msra.mxu0 %v298
        %365 = vmatprep.subr.mxu0 0.0
        %366 = vmatpush1.msra.mxu0 %v299
        %367 = vmatprep.subr.mxu0 0.0
        %368 = vmatpush1.msra.mxu0 %v300
        %369 = vmatprep.subr.mxu0 0.0
        %370 = vmatpush1.msra.mxu0 %v301
        %371 = vmatprep.subr.mxu0 0.0
        %372 = vmatpush1.msra.mxu0 %v302
        %373 = vmatprep.subr.mxu0 0.0
        %374 = vmatpush1.msra.mxu0 %v303
        %375 = vmatprep.mubr.f32.mxu0 %v265
        %376 = vmatmul.mubr.f32.gmra.mrb[0].mxu0 %v264
        %v377 = vpop.f32.mrb[0].mxu0
        %v378 = vadd.f32 %v309, %v377
        %v379 = vpop.f32.mrb[0].mxu0
        %380 = vmatprep.mubr.f32.mxu0 %v267
        %381 = vmatmul.mubr.f32.gmra.mrb[0].mxu0 %v266
        %v382 = vpop.f32.mrb[0].mxu0
        %v383 = vadd.f32 %v309, %v382
        %v384 = vpop.f32.mrb[0].mxu0
        %385 = vmatprep.mubr.f32.mxu0 %v269
        %386 = vmatmul.mubr.f32.gmra.mrb[0].mxu0 %v268
        %v387 = vpop.f32.mrb[0].mxu0
        %v388 = vadd.f32 %v309, %v387
        %v389 = vpop.f32.mrb[0].mxu0
        %390 = vmatprep.mubr.f32.mxu0 %v271
        %391 = vmatmul.mubr.f32.gmra.mrb[0].mxu0 %v270
        %v392 = vpop.f32.mrb[0].mxu0
        %v393 = vadd.f32 %v309, %v392
        %v394 = vpop.f32.mrb[0].mxu0
        %395 = vdwg.mxu0
        %vm396 = vcmp.gt.f32.partialorder %v378, 0.0
        %vm397 = vcmp.gt.f32.partialorder %v383, 0.0
        %vm398 = vcmp.gt.f32.partialorder %v388, 0.0
        %vm399 = vcmp.gt.f32.partialorder %v393, 0.0
        %v400 = vmul.f32 %v378, 0.01
        %v401 = vmul.f32 %v383, 0.01
        %v402 = vmul.f32 %v388, 0.01
        %v403 = vmul.f32 %v393, 0.01
        %v404 = vsel %vm396, %v378, %v400
        %v405 = vsel %vm397, %v383, %v401
        %v406 = vsel %vm398, %v388, %v402
        %v407 = vsel %vm399, %v393, %v403
        %v408 = vld [vmem:[%s3] sm:$0x1]
        %v410 = vlaneseq
        %v411 = vshrl.u32 %v410, 7
        %v412 = vsub.s32 0, %v411
        %v413 = vrot.slane %v408, %v412
        %v415 = vmul.f32 %v404, %v413
        %v416 = vmul.f32 %v405, %v413
        %v417 = vmul.f32 %v406, %v413
        %v418 = vmul.f32 %v407, %v413
        %419 = vadd.xlane.f32.xlu0 %v415
        %v420 = vpop.xlane.xlu0 %419
        %421 = vadd.xlane.f32.xlu0 %v416
        %v422 = vpop.xlane.xlu0 %421
        %423 = vadd.xlane.f32.xlu0 %v417
        %v424 = vpop.xlane.xlu0 %423
        %425 = vadd.xlane.f32.xlu0 %v418
        %v426 = vpop.xlane.xlu0 %425
        %s427 = sld [smem:[#allocation2]]
        %v428 = vstv %s427
        %v429 = vadd.f32 %v420, %v428
        %v430 = vadd.f32 %v422, %v428
        %v431 = vadd.f32 %v424, %v428
        %v432 = vadd.f32 %v426, %v428
        %v433 = vand.u32 2147483647, %v429
        %v434 = vand.u32 2147483647, %v430
        %v435 = vand.u32 2147483647, %v431
        %v436 = vand.u32 2147483647, %v432
        %v437 = vsub.f32 0.0, %v433
        %v438 = vsub.f32 0.0, %v434
        %v439 = vsub.f32 0.0, %v435
        %v440 = vsub.f32 0.0, %v436
        %v441 = vmul.f32 %v437, 1.442695
        %v442 = vpow.pop %v441
        %v443 = vmul.f32 %v438, 1.442695
        %v444 = vpow.pop %v443
        %v445 = vmul.f32 %v439, 1.442695
        %v446 = vpow.pop %v445
        %v447 = vmul.f32 %v440, 1.442695
        %v448 = vpow.pop %v447
        %vm449 = vcmp.ge.f32.partialorder %v429, 0.0
        %vm450 = vcmp.ge.f32.partialorder %v430, 0.0
        %vm451 = vcmp.ge.f32.partialorder %v431, 0.0
        %vm452 = vcmp.ge.f32.partialorder %v432, 0.0
        %v453 = vadd.f32 %v442, 1.0
        %v454 = vadd.f32 %v444, 1.0
        %v455 = vadd.f32 %v446, 1.0
        %v456 = vadd.f32 %v448, 1.0
        %v457 = vrcp.pop %v453
        %v458 = vmul.f32 1.0, %v457
        %v459 = vrcp.pop %v454
        %v460 = vmul.f32 1.0, %v459
        %v461 = vrcp.pop %v455
        %v462 = vmul.f32 1.0, %v461
        %v463 = vrcp.pop %v456
        %v464 = vmul.f32 1.0, %v463
        %v465 = vmul.f32 %v442, %v457
        %v466 = vmul.f32 %v444, %v459
        %v467 = vmul.f32 %v446, %v461
        %v468 = vmul.f32 %v448, %v463
        %v469 = vsel %vm449, %v458, %v465
        %v470 = vsel %vm450, %v460, %v466
        %v471 = vsel %vm451, %v462, %v467
        %v472 = vsel %vm452, %v464, %v468
        %vm473 = vcmask 7168
        %474 = vst.msk [vmem:[%s262] sm:$0xff] %vm473, %v469
        %475 = vst.msk [vmem:[%s262 + $0x8] sm:$0xff] %vm473, %v470
        %476 = vst.msk [vmem:[%s262 + $0x10] sm:$0xff] %vm473, %v471
        %477 = vst.msk [vmem:[%s262 + $0x18] sm:$0xff] %vm473, %v472
        %s478 = smul.u32 4, %s21
        %p479 = scmp.lt.s32.totalorder %s478, 7
        %s480 = scalar_select %p479, %s478, 7
        %s481 = smul.addr %s480, 8
        %s482 = scalar_lea.vmem %s5, %s481
        // Predicated region
        $region49: #{tpu_custom_call.1} parent=39 // pred_check
          %p483 = pneg %p149
        $region50: #{tpu_custom_call.1} parent=39 // pred_check_branch
          %485 = sbr.rel (%p483) target = $region52
        $region51: #{tpu_custom_call.1} parent=39 // pred_region
          %s486 = smul.u32 4, %s21
        $region52: #{tpu_custom_call.1} parent=39 // pred_fallthru
          _
      $region40: #{tpu_custom_call.1} parent=5 // pred_fallthru
        _
      %p487 = scmp.le.s32.totalorder 2, %s16
      // Predicated region
      $region53: #{tpu_custom_call.1} parent=5 // pred_check
        %p488 = pneg %p487
      $region54: #{tpu_custom_call.1} parent=5 // pred_check_branch
        %490 = sbr.rel (%p488) target = $region56
      $region55: #{tpu_custom_call.1} parent=5 // pred_region
        %s491 = ssub.s32 %s16, 2
        // Predicated region
        $region57: #{tpu_custom_call.1} parent=55 // pred_check
          %p492 = pneg %p155
        $region58: #{tpu_custom_call.1} parent=55 // pred_check_branch
          %494 = sbr.rel (%p492) target = $region60
        $region59: #{tpu_custom_call.1} parent=55 // pred_region
          %s495 = smul.u32 4, %s22
          %p496 = scmp.lt.s32.totalorder %s495, 7
          %s497 = scalar_select %p496, %s495, 7
          %s498 = smul.addr %s497, 8
          %s499 = scalar_lea.vmem %s5, %s498
        $region60: #{tpu_custom_call.1} parent=55 // pred_fallthru
          _
      $region56: #{tpu_custom_call.1} parent=5 // pred_fallthru
        _
    $region6: #{tpu_custom_call.1} parent=1 // loop_footer
      %s20 = sadd.s32 1, %s16
    $region7: #{tpu_custom_call.1} parent=1 // loop_footer_branch
      %15 = sbr.rel target = $region3
    $region8: #{tpu_custom_call.1} parent=1 // loop_exit
      _
    %500 = vsyncpa [#allocation4], 1
    %s501 = scalar_lea.sflag [#allocation4], 1
    %502 = vsyncpa %s501, 1
    %503 = vsyncpa [#allocation6], 1

</llo_original>
